<compile_context>
chip_gen: v6e
topology: v6e:2x2x1
jax: 0.10.0
libtpu: 0.0.40
codegen_flags: <defaults>
</compile_context>

<pallas_src>
import functools

import jax
import jax.numpy as jnp
from jax.experimental import pallas as pl
from jax.experimental.pallas import tpu as pltpu


# ---------------------------------------------------------------------------
# VMEM budget (generation aware)
# ---------------------------------------------------------------------------
def _vmem_budget_bytes():
    phys = None
    try:
        info = pltpu.get_tpu_info()
        phys = getattr(info, "vmem_capacity_bytes", None)
    except Exception:
        phys = None
    if not phys:
        phys = 64 * 1024 * 1024          # conservative (v7x per-TC)
    # leave headroom for compiler-internal scratch; cap at 96 MiB
    return int(min(96 * 1024 * 1024, (3 * int(phys)) // 4))


# ---------------------------------------------------------------------------
# Tile picker: byte-budgeted blocks, enough grid steps for megacore
# ---------------------------------------------------------------------------
def _choose_tiles(N, C, HW, block_budget_bytes, min_steps=4):
    """Return (nb, T): batch sub-block and spatial tile (multiple of 128 or HW)."""
    bytes_per_col = max(1, C * 4)
    t_target = max(128, block_budget_bytes // bytes_per_col)
    if HW <= 128 or HW <= t_target:
        T = HW
    else:
        T = max(128, (min(HW, t_target) // 128) * 128)

    nb = 1
    if T == HW:                                   # whole row fits: block batches too
        per_sample = C * HW * 4
        max_nb = max(1, block_budget_bytes // max(1, per_sample))
        for d in range(min(N, max_nb), 0, -1):
            if N % d == 0:
                nb = d
                break

    def n_steps(nb_, T_):
        return (N // nb_) * (-(-HW // T_))

    # ensure both TensorCores (v7x) get work: at least min_steps grid cells
    while n_steps(nb, T) < min_steps:
        if nb > 1:
            d = nb - 1
            while d > 1 and N % d != 0:
                d -= 1
            nb = max(1, d)
        elif T > 128:
            T = max(128, ((T // 2) // 128) * 128)
        else:
            break
    return nb, T


# ---------------------------------------------------------------------------
# Resident single-kernel path (small activations): stats + normalize + ReLU
# ---------------------------------------------------------------------------
def _bn_resident_kernel(x_ref, gamma_ref, beta_ref, o_ref, *, count, eps):
    x = x_ref[...]                                            # (N, C, HW) f32
    inv = 1.0 / count
    s = jnp.sum(jnp.sum(x, axis=2, keepdims=True), axis=0, keepdims=True)      # (1,C,1)
    sq = jnp.sum(jnp.sum(x * x, axis=2, keepdims=True), axis=0, keepdims=True)  # (1,C,1)
    mean = s * inv
    var = jnp.maximum(sq * inv - mean * mean, 0.0)            # biased var, clamped
    scale = jax.lax.rsqrt(var + eps) * gamma_ref[...]         # (1,C,1)
    shift = beta_ref[...] - mean * scale
    o_ref[...] = jnp.maximum(x * scale + shift, 0.0).astype(o_ref.dtype)


# ---------------------------------------------------------------------------
# Pass 1 (tiled): per-batch-block partial sums / sums-of-squares
# ---------------------------------------------------------------------------
def _bn_partial_kernel(x_ref, sum_ref, sq_ref, *, hw, tile, masked):
    # x_ref  : (nb, C, T)   one spatial tile of nb batch elements
    # sum_ref: (1, C, 1)    per-(batch-block) running sum      (accumulated over t)
    # sq_ref : (1, C, 1)    per-(batch-block) running sum(x^2)
    t = pl.program_id(1)

    @pl.when(t == 0)
    def _init():
        sum_ref[...] = jnp.zeros_like(sum_ref)
        sq_ref[...] = jnp.zeros_like(sq_ref)

    x = x_ref[...]                                            # (nb, C, T) f32
    if masked:                                                # non-dividing last tile
        col = jax.lax.broadcasted_iota(jnp.int32, x.shape, 2)
        x = jnp.where(col < (hw - t * tile), x, 0.0)

    s = jnp.sum(jnp.sum(x, axis=2, keepdims=True), axis=0, keepdims=True)
    q = jnp.sum(jnp.sum(x * x, axis=2, keepdims=True), axis=0, keepdims=True)
    sum_ref[...] += s
    sq_ref[...] += q


# ---------------------------------------------------------------------------
# Pass 2 (tiled): y = relu(x * scale + shift), lane-dense stores
# ---------------------------------------------------------------------------
def _bn_apply_kernel(scale_ref, shift_ref, x_ref, o_ref):
    y = x_ref[...] * scale_ref[...] + shift_ref[...]          # (nb, C, T)
    o_ref[...] = jnp.maximum(y, 0.0).astype(o_ref.dtype)


# ---------------------------------------------------------------------------
# Wrapper: training-mode BatchNorm2d + ReLU (NCHW in / NCHW out)
# ---------------------------------------------------------------------------
def naive_bn_relu(x_nchw, gamma, beta, *, eps=1e-5, force_tiled=False):
    # TODO(synk): running_mean / running_var momentum buffer updates are not
    # tracked; they do not affect the training-mode forward output.
    N, C, H, W = x_nchw.shape
    HW = H * W
    x = x_nchw.astype(jnp.float32).reshape(N, C, HW)   # contiguous collapse, free
    gamma = gamma.astype(jnp.float32).reshape(C, 1)
    beta = beta.astype(jnp.float32).reshape(C, 1)
    count = float(N * HW)

    vmem_limit = _vmem_budget_bytes()
    total_bytes = N * C * HW * 4

    # ---- VMEM-resident single-kernel path for small activations ------------
    if (not force_tiled) and (2 * total_bytes + (64 << 10)) <= int(vmem_limit * 0.6):
        full_spec = pl.BlockSpec((N, C, HW), lambda i: (0, 0, 0))
        vec_spec = pl.BlockSpec((C, 1), lambda i: (0, 0))
        y = pl.pallas_call(
            functools.partial(_bn_resident_kernel, count=count, eps=eps),
            out_shape=jax.ShapeDtypeStruct((N, C, HW), jnp.float32),
            grid=(1,),
            in_specs=[full_spec, vec_spec, vec_spec],
            out_specs=full_spec,
            compiler_params=pltpu.CompilerParams(
                dimension_semantics=("arbitrary",),
                vmem_limit_bytes=vmem_limit),
        )(x, gamma, beta)
        return y.reshape(N, C, H, W)

    # ---- tiled two-pass path ------------------------------------------------
    # pass 2 keeps ~4 x-sized buffers live (2 in + 2 out, double-buffered)
    block_budget = min(8 << 20, vmem_limit // 12)
    nb, T = _choose_tiles(N, C, HW, block_budget)
    n_blocks = N // nb
    t_blocks = pl.cdiv(HW, T)
    grid = (n_blocks, t_blocks)
    masked = (HW % T) != 0

    x_spec = pl.BlockSpec((nb, C, T), lambda n, t: (n, 0, t))
    part_spec = pl.BlockSpec((1, C, 1), lambda n, t: (n, 0, 0))
    cvec_spec = pl.BlockSpec((C, 1), lambda n, t: (0, 0))

    # pass 1: per-batch-block partial stats (N axis megacore-parallel)
    sums, sqs = pl.pallas_call(
        functools.partial(_bn_partial_kernel, hw=HW, tile=T, masked=masked),
        out_shape=(jax.ShapeDtypeStruct((n_blocks, C, 1), jnp.float32),
                   jax.ShapeDtypeStruct((n_blocks, C, 1), jnp.float32)),
        grid=grid,
        in_specs=[x_spec],
        out_specs=(part_spec, part_spec),
        compiler_params=pltpu.CompilerParams(
            dimension_semantics=("parallel", "arbitrary"),
            vmem_limit_bytes=vmem_limit),
    )(x)

    # tiny finalize (C scale/shift values) in plain JAX
    inv = 1.0 / count
    mean = jnp.sum(sums, axis=0) * inv                         # (C, 1)
    var = jnp.maximum(jnp.sum(sqs, axis=0) * inv - mean * mean, 0.0)
    scale = jax.lax.rsqrt(var + eps) * gamma                   # (C, 1)
    shift = beta - mean * scale                                # (C, 1)

    # pass 2: normalize + ReLU (fully parallel, lane-dense stores)
    y = pl.pallas_call(
        _bn_apply_kernel,
        out_shape=jax.ShapeDtypeStruct((N, C, HW), jnp.float32),
        grid=grid,
        in_specs=[cvec_spec, cvec_spec, x_spec],
        out_specs=x_spec,
        compiler_params=pltpu.CompilerParams(
            dimension_semantics=("parallel", "parallel"),
            vmem_limit_bytes=vmem_limit),
    )(scale, shift, x)

    return y.reshape(N, C, H, W)


# ---------------------------------------------------------------------------
# Pure-JAX reference (training-mode BN + affine + ReLU)
# ---------------------------------------------------------------------------
def _reference(x_nchw, gamma, beta, eps=1e-5):
    mean = jnp.mean(x_nchw, axis=(0, 2, 3), keepdims=True)
    var = jnp.mean(jnp.square(x_nchw - mean), axis=(0, 2, 3), keepdims=True)
    y = (x_nchw - mean) * jax.lax.rsqrt(var + eps)
    y = y * gamma.reshape(1, -1, 1, 1) + beta.reshape(1, -1, 1, 1)
    return jnp.maximum(y, 0.0)


if __name__ == "__main__":
    key = jax.random.PRNGKey(0)

    def run_case(k, shape, force_tiled, random_affine=False):
        N, C, H, W = shape
        kx, kg, kb = jax.random.split(k, 3)
        x = jax.random.normal(kx, shape, jnp.float32) * 2.0 + 0.5
        if random_affine:
            gamma = jax.random.normal(kg, (C,), jnp.float32) * 0.5 + 1.0
            beta = jax.random.normal(kb, (C,), jnp.float32) * 0.1
        else:
            gamma = jnp.ones((C,), jnp.float32)     # BN weight init = 1
            beta = jnp.zeros((C,), jnp.float32)     # BN bias   init = 0
        out = jax.block_until_ready(
            naive_bn_relu(x, gamma, beta, force_tiled=force_tiled))
        ref = _reference(x, gamma, beta)
        assert out.shape == shape, out.shape
        assert bool(jnp.all(jnp.isfinite(out)))
        err = float(jnp.max(jnp.abs(out - ref)))
        assert err < 1e-4, f"{shape} tiled={force_tiled}: max abs err {err}"

    k1, k2, k3 = jax.random.split(key, 3)
    run_case(k1, (2, 4, 16, 16), force_tiled=False)                       # resident path
    run_case(k2, (2, 4, 16, 16), force_tiled=True)                        # tiled path
    run_case(k3, (2, 4, 20, 20), force_tiled=True, random_affine=True)    # masked tile
    print("KERNEL_OK")
</pallas_src>

<mosaic_0001>
module attributes {stable_mosaic.version = 11 : i64} {
  func.func @_bn_resident_kernel(%arg0: i32, %arg1: memref<2x4x256xf32, #tpu.memory_space<vmem>>, %arg2: memref<4x1xf32, #tpu.memory_space<vmem>>, %arg3: memref<4x1xf32, #tpu.memory_space<vmem>>, %arg4: memref<2x4x256xf32, #tpu.memory_space<vmem>>) attributes {dimension_semantics = [#tpu.dimension_semantics<arbitrary>], iteration_bounds = array<i64: 1>, scalar_prefetch = 0 : i64, scratch_operands = 0 : i64, tpu.core_type = #tpu.core_type<tc>, window_params = [{pipeline_mode = #tpu.pipeline_mode<synchronous>, transform_indices = @transform_0, window_bounds = array<i64: 2, 4, 256>}, {pipeline_mode = #tpu.pipeline_mode<synchronous>, transform_indices = @transform_1, window_bounds = array<i64: 4, 1>}, {pipeline_mode = #tpu.pipeline_mode<synchronous>, transform_indices = @transform_2, window_bounds = array<i64: 4, 1>}, {pipeline_mode = #tpu.pipeline_mode<synchronous>, transform_indices = @transform_3, window_bounds = array<i64: 2, 4, 256>}]} {
    %c0 = arith.constant 0 : index
    %c0_0 = arith.constant 0 : index
    %c0_1 = arith.constant 0 : index
    %0 = vector.load %arg1[%c0, %c0_0, %c0_1] : memref<2x4x256xf32, #tpu.memory_space<vmem>>, vector<2x4x256xf32>
    %cst = arith.constant dense<0.000000e+00> : vector<2x4xf32>
    %1 = vector.multi_reduction <add>, %0, %cst [2] : vector<2x4x256xf32> to vector<2x4xf32>
    %2 = vector.shape_cast %1 : vector<2x4xf32> to vector<2x4x1xf32>
    %cst_2 = arith.constant dense<0.000000e+00> : vector<4x1xf32>
    %3 = vector.multi_reduction <add>, %2, %cst_2 [0] : vector<2x4x1xf32> to vector<4x1xf32>
    %4 = vector.shape_cast %3 : vector<4x1xf32> to vector<1x4x1xf32>
    %5 = arith.mulf %0, %0 : vector<2x4x256xf32>
    %cst_3 = arith.constant dense<0.000000e+00> : vector<2x4xf32>
    %6 = vector.multi_reduction <add>, %5, %cst_3 [2] : vector<2x4x256xf32> to vector<2x4xf32>
    %7 = vector.shape_cast %6 : vector<2x4xf32> to vector<2x4x1xf32>
    %cst_4 = arith.constant dense<0.000000e+00> : vector<4x1xf32>
    %8 = vector.multi_reduction <add>, %7, %cst_4 [0] : vector<2x4x1xf32> to vector<4x1xf32>
    %9 = vector.shape_cast %8 : vector<4x1xf32> to vector<1x4x1xf32>
    %cst_5 = arith.constant 0.001953125 : f32
    %10 = vector.broadcast %cst_5 : f32 to vector<1x4x1xf32>
    %11 = arith.mulf %4, %10 : vector<1x4x1xf32>
    %cst_6 = arith.constant 0.001953125 : f32
    %12 = vector.broadcast %cst_6 : f32 to vector<1x4x1xf32>
    %13 = arith.mulf %9, %12 : vector<1x4x1xf32>
    %14 = arith.mulf %11, %11 : vector<1x4x1xf32>
    %15 = arith.subf %13, %14 : vector<1x4x1xf32>
    %cst_7 = arith.constant 0.000000e+00 : f32
    %16 = vector.broadcast %cst_7 : f32 to vector<1x4x1xf32>
    %17 = arith.maximumf %15, %16 : vector<1x4x1xf32>
    %cst_8 = arith.constant 9.99999974E-6 : f32
    %18 = vector.broadcast %cst_8 : f32 to vector<1x4x1xf32>
    %19 = arith.addf %17, %18 : vector<1x4x1xf32>
    %20 = math.rsqrt %19 : vector<1x4x1xf32>
    %c0_9 = arith.constant 0 : index
    %c0_10 = arith.constant 0 : index
    %21 = vector.load %arg2[%c0_9, %c0_10] : memref<4x1xf32, #tpu.memory_space<vmem>>, vector<4x1xf32>
    %22 = vector.shape_cast %21 : vector<4x1xf32> to vector<1x4x1xf32>
    %23 = arith.mulf %20, %22 : vector<1x4x1xf32>
    %c0_11 = arith.constant 0 : index
    %c0_12 = arith.constant 0 : index
    %24 = vector.load %arg3[%c0_11, %c0_12] : memref<4x1xf32, #tpu.memory_space<vmem>>, vector<4x1xf32>
    %25 = arith.mulf %11, %23 : vector<1x4x1xf32>
    %26 = vector.shape_cast %24 : vector<4x1xf32> to vector<1x4x1xf32>
    %27 = arith.subf %26, %25 : vector<1x4x1xf32>
    %28 = vector.broadcast %23 : vector<1x4x1xf32> to vector<2x4x256xf32>
    %29 = arith.mulf %0, %28 : vector<2x4x256xf32>
    %30 = vector.broadcast %27 : vector<1x4x1xf32> to vector<2x4x256xf32>
    %31 = arith.addf %29, %30 : vector<2x4x256xf32>
    %cst_13 = arith.constant 0.000000e+00 : f32
    %32 = vector.broadcast %cst_13 : f32 to vector<2x4x256xf32>
    %33 = arith.maximumf %31, %32 : vector<2x4x256xf32>
    %c0_14 = arith.constant 0 : index
    %c0_15 = arith.constant 0 : index
    %c0_16 = arith.constant 0 : index
    %34 = vector.load %arg4[%c0_14, %c0_15, %c0_16] : memref<2x4x256xf32, #tpu.memory_space<vmem>>, vector<2x4x256xf32>
    tpu.vector_store %arg4[%c0_14, %c0_15, %c0_16], %33 {strides = array<i32>} : memref<2x4x256xf32, #tpu.memory_space<vmem>>, vector<2x4x256xf32>,
    return
  }
  func.func @transform_0(%arg0: i32) -> (i32, i32, i32) {
    %c0_i32 = arith.constant 0 : i32
    %c0_i32_0 = arith.constant 0 : i32
    %c0_i32_1 = arith.constant 0 : i32
    %c0_i32_2 = arith.constant 0 : i32
    return %c0_i32, %c0_i32_0, %c0_i32_1 : i32, i32, i32
  }
  func.func @transform_1(%arg0: i32) -> (i32, i32) {
    %c0_i32 = arith.constant 0 : i32
    %c0_i32_0 = arith.constant 0 : i32
    %c0_i32_1 = arith.constant 0 : i32
    return %c0_i32, %c0_i32_0 : i32, i32
  }
  func.func @transform_2(%arg0: i32) -> (i32, i32) {
    %c0_i32 = arith.constant 0 : i32
    %c0_i32_0 = arith.constant 0 : i32
    %c0_i32_1 = arith.constant 0 : i32
    return %c0_i32, %c0_i32_0 : i32, i32
  }
  func.func @transform_3(%arg0: i32) -> (i32, i32, i32) {
    %c0_i32 = arith.constant 0 : i32
    %c0_i32_0 = arith.constant 0 : i32
    %c0_i32_1 = arith.constant 0 : i32
    %c0_i32_2 = arith.constant 0 : i32
    return %c0_i32, %c0_i32_0, %c0_i32_1 : i32, i32, i32
  }
}

</mosaic_0001>

<llo_original>
// kernel: tpu_custom_call.1
$region0: #{tpu_custom_call.1}
  #allocation0 [shape = 'u32[]', space=smem, size = 0x4, offset = 0x4, fixed_abs, tag = 'smem constant byte address 0x4 - core index']
  #allocation1 [shape = 'u32[144,128]{1,0:T(1,128)}', space=vmem, size = 0x12000, scoped, tag = 'internal scratch']
  %s0 = inlined_call_operand.hbm [shape: f32[2,4,256], index: 0, kind: input, shape index: {}]
  %s1 = inlined_call_operand.vmem [shape: f32[4,1], index: 1, kind: input, shape index: {}]
  %s2 = inlined_call_operand.vmem [shape: f32[4,1], index: 2, kind: input, shape index: {}]
  %s3 = inlined_call_operand.hbm [shape: f32[2,4,256], index: 3, kind: output, shape index: {}]
  %s4 = sld [smem:[#allocation0]]
  $region26: #{tpu_custom_call.1} parent=0
    _
  %s6 = ssub.s32 1, %s4
  %s7 = scalar_select 0, %s6, %s4
  $region1: #{tpu_custom_call.1} parent=0
    #allocation2 [shape = 'u8[8192]{0}', space=vmem, size = 0x2000, scoped, tag = 'input window, operand 0, single buffered']
    #allocation3 [shape = 's32[1]{0}', space=sflag, size = 0x4, scoped, tag = 'scoped memory for tpu_custom_call.1']
    #allocation4 [shape = 's32[1]{0}', space=sflag, size = 0x4, scoped, tag = 'scoped memory for tpu_custom_call.1']
    #allocation5 [shape = 'u8[8192]{0}', space=vmem, size = 0x2000, scoped, tag = 'output window, operand 0, single buffered']
    %8 = vsyncpa [#allocation3], 0
    %9 = vsyncpa [#allocation4], 0
    // Predicated region
    $region2: #{tpu_custom_call.1} parent=1 // pred_check
      _
    $region3: #{tpu_custom_call.1} parent=1 // pred_check_branch
      %11 = sbr.rel (0) target = $region5
    $region4: #{tpu_custom_call.1} parent=1 // pred_region
      %s13 = ssub.s32 256, 256
      %14 = vsyncadd [#allocation3], %s13
      %s15 = sshll.u32 [#allocation2], 4
      %s16 = int_to_ptr.vmem [resolvable:$true] %s15
      %21 = dma.hbm_to_vmem [thread:$0]  %s0, 256, %s16, [#allocation3], 128, 128, 8
    $region5: #{tpu_custom_call.1} parent=1 // pred_fallthru
      _
    // Predicated region
    $region6: #{tpu_custom_call.1} parent=1 // pred_check
      _
    $region7: #{tpu_custom_call.1} parent=1 // pred_check_branch
      %23 = sbr.rel (0) target = $region9
    $region8: #{tpu_custom_call.1} parent=1 // pred_region
      _
    $region9: #{tpu_custom_call.1} parent=1 // pred_fallthru
      _
    // Predicated region
    $region10: #{tpu_custom_call.1} parent=1 // pred_check
      _
    $region11: #{tpu_custom_call.1} parent=1 // pred_check_branch
      %25 = sbr.rel (0) target = $region13
    $region12: #{tpu_custom_call.1} parent=1 // pred_region
      _
    $region13: #{tpu_custom_call.1} parent=1 // pred_fallthru
      _
    // Predicated region
    $region14: #{tpu_custom_call.1} parent=1 // pred_check
      _
    $region15: #{tpu_custom_call.1} parent=1 // pred_check_branch
      %27 = sbr.rel (0) target = $region17
    $region16: #{tpu_custom_call.1} parent=1 // pred_region
      %28 = dma.done [#allocation3], 256
    $region17: #{tpu_custom_call.1} parent=1 // pred_fallthru
      _
    %v29 = vld [vmem:[#allocation2] sm:$0xff]
    %v30 = vld [vmem:[#allocation2 + $0x8] sm:$0xff]
    %v33 = vcombine.high %v29, %v29
    %v34 = vcombine.high %v30, %v30
    %vm37 = vcmask 1043456
    %v38 = vsel %vm37, %v29, 0.0
    %v39 = vsel %vm37, %v33, 0.0
    %v40 = vadd.f32 %v38, %v39
    %41 = vadd.xlane.f32.xlu0 %v40
    %v42 = vpop.xlane.xlu0 %41
    %v43 = vsel %vm37, %v30, 0.0
    %v44 = vsel %vm37, %v34, 0.0
    %v45 = vadd.f32 %v43, %v44
    %46 = vadd.xlane.f32.xlu0 %v45
    %v47 = vpop.xlane.xlu0 %46
    %v48 = vsel %vm37, %v42, 0.0
    %v49 = vsel %vm37, %v47, 0.0
    %v50 = vadd.f32 %v48, %v49
    %v51 = vmul.f32 %v29, %v29
    %v52 = vmul.f32 %v30, %v30
    %v55 = vcombine.high %v51, %v51
    %v56 = vcombine.high %v52, %v52
    %v59 = vsel %vm37, %v51, 0.0
    %v60 = vsel %vm37, %v55, 0.0
    %v61 = vadd.f32 %v59, %v60
    %62 = vadd.xlane.f32.xlu0 %v61
    %v63 = vpop.xlane.xlu0 %62
    %v64 = vsel %vm37, %v52, 0.0
    %v65 = vsel %vm37, %v56, 0.0
    %v66 = vadd.f32 %v64, %v65
    %67 = vadd.xlane.f32.xlu0 %v66
    %v68 = vpop.xlane.xlu0 %67
    %v69 = vsel %vm37, %v63, 0.0
    %v70 = vsel %vm37, %v68, 0.0
    %v71 = vadd.f32 %v69, %v70
    %v72 = vmul.f32 %v50, 0.001953125
    %v73 = vmul.f32 %v71, 0.001953125
    %v74 = vmul.f32 %v72, %v72
    %v75 = vsub.f32 %v73, %v74
    %v76 = vmax.f32 %v75, 0.0
    %v77 = vadd.f32 %v76, 1e-05
    %v78 = vrsqrt.pop %v77
    %v79 = vld [vmem:[%s1] sm:$0xf]
    %v80 = vmul.f32 %v78, %v79
    %v81 = vld [vmem:[%s2] sm:$0xf]
    %v82 = vmul.f32 %v72, %v80
    %v83 = vsub.f32 %v81, %v82
    %85 = vset.pattern.permute.xlu0 0
    %86 = vperm.xlu0 %85, %v80
    %v87 = vpop.permute.xlu0 %86
    %v89 = vunpack.c.l.s4 839922192
    %v90 = vunpack.c.0.s8 %v89
    %v91 = vlaneseq
    %v92 = vshrl.u32 %v91, 7
    %v93 = vsub.s32 %v90, %v92
    %v94 = vrot.slane %v87, %v93
    %v96 = vmul.f32 %v29, %v94
    %v97 = vmul.f32 %v30, %v94
    %99 = vset.pattern.permute.xlu0 0
    %100 = vperm.xlu0 %99, %v83
    %v101 = vpop.permute.xlu0 %100
    %v103 = vunpack.c.l.s4 839922192
    %v104 = vunpack.c.0.s8 %v103
    %v105 = vlaneseq
    %v106 = vshrl.u32 %v105, 7
    %v107 = vsub.s32 %v104, %v106
    %v108 = vrot.slane %v101, %v107
    %v110 = vadd.f32 %v96, %v108
    %v111 = vadd.f32 %v97, %v108
    %v112 = vmax.f32 %v110, 0.0
    %v113 = vmax.f32 %v111, 0.0
    %114 = vst [vmem:[#allocation5] sm:$0xff] %v112
    %115 = vst [vmem:[#allocation5 + $0x8] sm:$0xff] %v113
    // Predicated region
    $region18: #{tpu_custom_call.1} parent=1 // pred_check
      _
    $region19: #{tpu_custom_call.1} parent=1 // pred_check_branch
      %117 = sbr.rel (0) target = $region21
    $region20: #{tpu_custom_call.1} parent=1 // pred_region
      %s119 = ssub.s32 256, 256
      %120 = vsyncadd [#allocation4], %s119
      %s121 = sshll.u32 [#allocation5], 4
      %s122 = int_to_ptr.vmem [resolvable:$true] %s121
      %127 = dma.vmem_to_hbm [thread:$0]  %s122, 256, %s3, [#allocation4], 128, 128, 8
    $region21: #{tpu_custom_call.1} parent=1 // pred_fallthru
      _
    // Predicated region
    $region22: #{tpu_custom_call.1} parent=1 // pred_check
      _
    $region23: #{tpu_custom_call.1} parent=1 // pred_check_branch
      %129 = sbr.rel (0) target = $region25
    $region24: #{tpu_custom_call.1} parent=1 // pred_region
      %130 = dma.done [#allocation4], 256
    $region25: #{tpu_custom_call.1} parent=1 // pred_fallthru
      _
    %131 = vsyncpa [#allocation3], 1
    %132 = vsyncpa [#allocation4], 1

</llo_original>
